<compile_context>
chip_gen: v5e
topology: v5e:2x2
jax: 0.10.0
libtpu: 0.0.40
codegen_flags: <defaults>
</compile_context>

<pallas_src>
import functools
import math

import jax
import jax.numpy as jnp
from jax import lax
from jax.experimental import pallas as pl
from jax.experimental.pallas import tpu as pltpu


def _round_up(x, m):
    return ((x + m - 1) // m) * m


def _cross_term_kernel(target_ref, output_ref, out_ref, *,
                       smoothing_value, confidence, padding_idx, pad_col,
                       v_actual, tv, tb):
    """Accumulates sum(model_prob * output) into a lane-dense (8, tv) partial
    per batch tile (the output block, resident across the vocab grid axis)."""
    j = pl.program_id(1)

    @pl.when(j == 0)
    def _():
        out_ref[...] = jnp.zeros_like(out_ref)

    tgt = target_ref[...]                                # (tb, 1) int32
    out = output_ref[...].astype(jnp.float32)            # (tb, tv) log-probs

    # Global vocab (column) index of every element in this tile.
    col = lax.broadcasted_iota(jnp.int32, out.shape, 1) + j * tv

    # Smoothed ground-truth distribution for this tile (constants only, no log).
    mp = jnp.where(col == pad_col, 0.0, smoothing_value)    # one_hot[pad] = 0
    mp = jnp.where(col == tgt, confidence, mp)              # scatter confidence
    mp = jnp.where(tgt == padding_idx, 0.0, mp)             # masked_fill padded rows
    if v_actual % tv != 0:                                  # mask padded vocab cols
        mp = jnp.where(col < v_actual, mp, 0.0)

    contrib = mp * out                                      # (tb, tv)

    # Fold sublane-groups together with aligned, pure VPU vreg adds (no XLU).
    acc = contrib[0:8, :]
    for r in range(1, tb // 8):
        acc = acc + contrib[r * 8:(r + 1) * 8, :]
    out_ref[...] += acc


def label_smoothing_loss(output, target, *, label_smoothing, tgt_vocab_size,
                         ignore_index, tb=256, tv=2048):
    """output: (B, V) float (f32 or bf16) log-probs; target: (B,) int.
    Returns scalar f32 loss identical to LabelSmoothingLoss.forward."""
    B, V = output.shape
    assert V == tgt_vocab_size
    assert 0.0 < label_smoothing <= 1.0

    smoothing_value = label_smoothing / (tgt_vocab_size - 2)
    confidence = 1.0 - label_smoothing
    # PyTorch `one_hot[padding_idx] = 0` follows Python negative indexing.
    pad_col = ignore_index if ignore_index >= 0 else ignore_index + V

    # Tile sizes: multiples of (8, 128), clamped to the padded array extents.
    tb = _round_up(max(8, min(tb, _round_up(B, 8))), 8)
    tv = _round_up(max(128, min(tv, _round_up(V, 128))), 128)
    B_pad = _round_up(B, tb)
    V_pad = _round_up(V, tv)

    target_i = target.astype(jnp.int32)
    target2d = jnp.pad(target_i.reshape(B, 1), ((0, B_pad - B), (0, 0)),
                       constant_values=ignore_index)
    out_padded = output
    if (B_pad, V_pad) != (B, V):
        out_padded = jnp.pad(output, ((0, B_pad - B), (0, V_pad - V)))

    num_bt = B_pad // tb
    kernel = functools.partial(
        _cross_term_kernel,
        smoothing_value=float(smoothing_value),
        confidence=float(confidence),
        padding_idx=int(ignore_index),
        pad_col=int(pad_col),
        v_actual=int(V),
        tv=int(tv),
        tb=int(tb),
    )

    partials = pl.pallas_call(
        kernel,
        out_shape=jax.ShapeDtypeStruct((num_bt * 8, tv), jnp.float32),
        grid_spec=pltpu.PrefetchScalarGridSpec(
            num_scalar_prefetch=0,
            grid=(num_bt, V_pad // tv),
            in_specs=[
                pl.BlockSpec((tb, 1), lambda i, j: (i, 0)),    # target ids
                pl.BlockSpec((tb, tv), lambda i, j: (i, j)),   # model log-probs
            ],
            out_specs=pl.BlockSpec((8, tv), lambda i, j: (i, 0)),
        ),
        compiler_params=pltpu.CompilerParams(
            dimension_semantics=("parallel", "arbitrary"),
            vmem_limit_bytes=32 * 1024 * 1024,
        ),
    )(target2d, out_padded)

    cross = jnp.sum(partials)                  # sum over all elements of y * x

    # Analytic  sum over all elements of y * log y  (hoisted out of the kernel).
    s_log_s = smoothing_value * math.log(smoothing_value) if smoothing_value > 0 else 0.0
    c_log_c = confidence * math.log(confidence) if confidence > 0 else 0.0
    valid = target_i != ignore_index
    n_smooth = jnp.where(target_i == pad_col, V - 1, V - 2).astype(jnp.float32)
    row_const = n_smooth * jnp.float32(s_log_s) + jnp.float32(c_log_c)
    const_term = jnp.sum(jnp.where(valid, row_const, 0.0))

    return const_term - cross


def _reference(output, target, *, label_smoothing, tgt_vocab_size, ignore_index):
    """Pure-JAX transcription of the PyTorch module (for verification)."""
    B, V = output.shape
    smoothing_value = label_smoothing / (tgt_vocab_size - 2)
    confidence = 1.0 - label_smoothing
    one_hot = jnp.full((V,), smoothing_value, jnp.float32).at[ignore_index].set(0.0)
    mp = jnp.tile(one_hot[None, :], (B, 1))
    mp = mp.at[jnp.arange(B), target].set(confidence)
    mp = jnp.where((target == ignore_index)[:, None], 0.0, mp)
    return jnp.sum(jnp.where(mp > 0,
                             mp * (jnp.log(jnp.maximum(mp, 1e-30)) - output), 0.0))


if __name__ == "__main__":
    # Deterministic "module init": label_smoothing / vocab / padding idx.
    LABEL_SMOOTHING = 0.1
    VOCAB = 320          # deliberately NOT a multiple of 128 (exercises column masking)
    PAD_IDX = 0          # fastSum uses a valid pad token id
    B = 10               # deliberately NOT a multiple of 8 (exercises row padding)

    key = jax.random.PRNGKey(0)
    k_logits, k_tgt = jax.random.split(key)

    logits = jax.random.normal(k_logits, (B, VOCAB), jnp.float32)
    output = jax.nn.log_softmax(logits, axis=-1)          # model log-probs (kl_div input)
    target = jax.random.randint(k_tgt, (B,), 0, VOCAB, jnp.int32)
    target = target.at[3].set(PAD_IDX)                    # ensure one padded row

    loss = label_smoothing_loss(
        output, target,
        label_smoothing=LABEL_SMOOTHING,
        tgt_vocab_size=VOCAB,
        ignore_index=PAD_IDX,
    )
    loss = jax.block_until_ready(loss)

    ref = _reference(output, target,
                     label_smoothing=LABEL_SMOOTHING,
                     tgt_vocab_size=VOCAB,
                     ignore_index=PAD_IDX)
    assert jnp.allclose(loss, ref, rtol=1e-5, atol=1e-4), (loss, ref)

    print("KERNEL_OK")
</pallas_src>

<mosaic_0001>
module attributes {stable_mosaic.version = 11 : i64} {
  func.func @_cross_term_kernel(%arg0: i32, %arg1: i32, %arg2: memref<16x1xi32, #tpu.memory_space<vmem>>, %arg3: memref<16x384xf32, #tpu.memory_space<vmem>>, %arg4: memref<8x384xf32, #tpu.memory_space<vmem>>) attributes {dimension_semantics = [#tpu.dimension_semantics<parallel>, #tpu.dimension_semantics<arbitrary>], iteration_bounds = array<i64: 1, 1>, scalar_prefetch = 0 : i64, scratch_operands = 0 : i64, tpu.core_type = #tpu.core_type<tc>, window_params = [{transform_indices = @transform_0, window_bounds = array<i64: 16, 1>}, {transform_indices = @transform_1, window_bounds = array<i64: 16, 384>}, {transform_indices = @transform_2, window_bounds = array<i64: 8, 384>}]} {
    %c0_i32 = arith.constant 0 : i32
    %0 = arith.cmpi eq, %arg1, %c0_i32 : i32
    %1 = arith.extui %0 : i1 to i32
    %c0_i32_0 = arith.constant 0 : i32
    %2 = arith.cmpi ne, %1, %c0_i32_0 : i32
    scf.if %2 {
      %cst_14 = arith.constant 0.000000e+00 : f32
      %35 = vector.broadcast %cst_14 : f32 to vector<8x384xf32>
      %c0_15 = arith.constant 0 : index
      %c0_16 = arith.constant 0 : index
      %36 = vector.load %arg4[%c0_15, %c0_16] : memref<8x384xf32, #tpu.memory_space<vmem>>, vector<8x384xf32>
      tpu.vector_store %arg4[%c0_15, %c0_16], %35 {strides = array<i32>} : memref<8x384xf32, #tpu.memory_space<vmem>>, vector<8x384xf32>,
    } else {
    }
    %c0 = arith.constant 0 : index
    %c0_1 = arith.constant 0 : index
    %3 = vector.load %arg2[%c0, %c0_1] : memref<16x1xi32, #tpu.memory_space<vmem>>, vector<16x1xi32>
    %c0_2 = arith.constant 0 : index
    %c0_3 = arith.constant 0 : index
    %4 = vector.load %arg3[%c0_2, %c0_3] : memref<16x384xf32, #tpu.memory_space<vmem>>, vector<16x384xf32>
    %5 = tpu.iota {dimensions = array<i32: 1>} : vector<16x384xi32>
    %c384_i32 = arith.constant 384 : i32
    %6 = arith.muli %arg1, %c384_i32 : i32
    %7 = vector.broadcast %6 : i32 to vector<16x384xi32>
    %8 = arith.addi %5, %7 : vector<16x384xi32>
    %c0_i32_4 = arith.constant 0 : i32
    %9 = vector.broadcast %c0_i32_4 : i32 to vector<16x384xi32>
    %10 = arith.cmpi eq, %8, %9 : vector<16x384xi32>
    %cst = arith.constant 0.000000e+00 : f32
    %cst_5 = arith.constant 3.14465404E-4 : f32
    %11 = vector.broadcast %cst : f32 to vector<16x384xf32>
    %12 = vector.broadcast %cst_5 : f32 to vector<16x384xf32>
    %13 = arith.select %10, %11, %12 : vector<16x384xi1>, vector<16x384xf32>
    %14 = vector.broadcast %3 : vector<16x1xi32> to vector<16x384xi32>
    %15 = arith.cmpi eq, %8, %14 : vector<16x384xi32>
    %cst_6 = arith.constant 0.899999976 : f32
    %16 = vector.broadcast %cst_6 : f32 to vector<16x384xf32>
    %17 = arith.select %15, %16, %13 : vector<16x384xi1>, vector<16x384xf32>
    %c0_i32_7 = arith.constant 0 : i32
    %18 = vector.broadcast %c0_i32_7 : i32 to vector<16x1xi32>
    %19 = arith.cmpi eq, %3, %18 : vector<16x1xi32>
    %cst_8 = arith.constant 0.000000e+00 : f32
    %20 = vector.shape_cast %19 : vector<16x1xi1> to vector<16x1xi1>
    %21 = vector.broadcast %20 : vector<16x1xi1> to vector<16x384xi1>
    %22 = vector.broadcast %cst_8 : f32 to vector<16x384xf32>
    %23 = arith.select %21, %22, %17 : vector<16x384xi1>, vector<16x384xf32>
    %c320_i32 = arith.constant 320 : i32
    %24 = vector.broadcast %c320_i32 : i32 to vector<16x384xi32>
    %25 = arith.cmpi slt, %8, %24 : vector<16x384xi32>
    %cst_9 = arith.constant 0.000000e+00 : f32
    %26 = vector.broadcast %cst_9 : f32 to vector<16x384xf32>
    %27 = arith.select %25, %23, %26 : vector<16x384xi1>, vector<16x384xf32>
    %28 = arith.mulf %27, %4 : vector<16x384xf32>
    %29 = vector.extract_strided_slice %28 {offsets = [0, 0], sizes = [8, 384], strides = [1, 1]} : vector<16x384xf32> to vector<8x384xf32>
    %30 = vector.extract_strided_slice %28 {offsets = [8, 0], sizes = [8, 384], strides = [1, 1]} : vector<16x384xf32> to vector<8x384xf32>
    %31 = arith.addf %29, %30 : vector<8x384xf32>
    %c0_10 = arith.constant 0 : index
    %c0_11 = arith.constant 0 : index
    %32 = vector.load %arg4[%c0_10, %c0_11] : memref<8x384xf32, #tpu.memory_space<vmem>>, vector<8x384xf32>
    %33 = arith.addf %32, %31 : vector<8x384xf32>
    %c0_12 = arith.constant 0 : index
    %c0_13 = arith.constant 0 : index
    %34 = vector.load %arg4[%c0_12, %c0_13] : memref<8x384xf32, #tpu.memory_space<vmem>>, vector<8x384xf32>
    tpu.vector_store %arg4[%c0_12, %c0_13], %33 {strides = array<i32>} : memref<8x384xf32, #tpu.memory_space<vmem>>, vector<8x384xf32>,
    return
  }
  func.func @transform_0(%arg0: i32, %arg1: i32) -> (i32, i32) {
    %c0_i32 = arith.constant 0 : i32
    %c0_i32_0 = arith.constant 0 : i32
    return %arg0, %c0_i32 : i32, i32
  }
  func.func @transform_1(%arg0: i32, %arg1: i32) -> (i32, i32) {
    %c0_i32 = arith.constant 0 : i32
    return %arg0, %arg1 : i32, i32
  }
  func.func @transform_2(%arg0: i32, %arg1: i32) -> (i32, i32) {
    %c0_i32 = arith.constant 0 : i32
    %c0_i32_0 = arith.constant 0 : i32
    return %arg0, %c0_i32 : i32, i32
  }
}

</mosaic_0001>

<llo_original>
// kernel: tpu_custom_call.1
$region0: #{tpu_custom_call.1}
  #allocation0 [shape = 'u32[]', space=smem, size = 0x4, offset = 0x4, fixed_abs, tag = 'smem constant byte address 0x4 - core index']
  #allocation1 [shape = 'u32[72,128]{1,0:T(1,128)}', space=vmem, size = 0x9000, scoped, tag = 'internal scratch']
  %s0 = inlined_call_operand.vmem [shape: s32[16,1], index: 0, kind: input, shape index: {}]
  %s1 = inlined_call_operand.hbm [shape: f32[16,384], index: 1, kind: input, shape index: {}]
  %s2 = inlined_call_operand.hbm [shape: f32[8,384], index: 2, kind: output, shape index: {}]
  %s3 = sld [smem:[#allocation0]]
  $region26: #{tpu_custom_call.1} parent=0
    _
  %s5 = ssub.s32 1, %s3
  %s6 = scalar_select 0, %s5, %s3
  $region1: #{tpu_custom_call.1} parent=0
    #allocation2 [shape = 'u8[24576]{0}', space=vmem, size = 0x6000, scoped, tag = 'input window, operand 1, single buffered']
    #allocation3 [shape = 's32[1]{0}', space=sflag, size = 0x4, scoped, tag = 'scoped memory for tpu_custom_call.1']
    #allocation4 [shape = 's32[1]{0}', space=sflag, size = 0x4, scoped, tag = 'scoped memory for tpu_custom_call.1']
    #allocation5 [shape = 'u8[12288]{0}', space=vmem, size = 0x3000, scoped, tag = 'output window, operand 0, single buffered']
    %7 = vsyncpa [#allocation3], 0
    %8 = vsyncpa [#allocation4], 0
    // Predicated region
    $region2: #{tpu_custom_call.1} parent=1 // pred_check
      _
    $region3: #{tpu_custom_call.1} parent=1 // pred_check_branch
      %10 = sbr.rel (0) target = $region5
    $region4: #{tpu_custom_call.1} parent=1 // pred_region
      _
    $region5: #{tpu_custom_call.1} parent=1 // pred_fallthru
      _
    // Predicated region
    $region6: #{tpu_custom_call.1} parent=1 // pred_check
      _
    $region7: #{tpu_custom_call.1} parent=1 // pred_check_branch
      %12 = sbr.rel (0) target = $region9
    $region8: #{tpu_custom_call.1} parent=1 // pred_region
      %14 = vsyncadd [#allocation3], 0
      %s15 = sshll.u32 %s1, 4
      %s16 = int_to_ptr.hbm [resolvable:$true] %s15
      %s17 = sshll.u32 [#allocation2], 4
      %s18 = int_to_ptr.vmem [resolvable:$true] %s17
      %23 = dma.hbm_to_vmem [thread:$0]  %s16, 768, %s18, [#allocation3], 384, 384, 24
    $region9: #{tpu_custom_call.1} parent=1 // pred_fallthru
      _
    // Predicated region
    $region10: #{tpu_custom_call.1} parent=1 // pred_check
      _
    $region11: #{tpu_custom_call.1} parent=1 // pred_check_branch
      %25 = sbr.rel (0) target = $region13
    $region12: #{tpu_custom_call.1} parent=1 // pred_region
      %27 = dma.done [#allocation3], 768
    $region13: #{tpu_custom_call.1} parent=1 // pred_fallthru
      _
    %p28 = scmp.eq.s32.totalorder 0, 0
    // Predicated region
    $region14: #{tpu_custom_call.1} parent=1 // pred_check
      %p29 = pneg %p28
    $region15: #{tpu_custom_call.1} parent=1 // pred_check_branch
      %31 = sbr.rel (%p29) target = $region17
    $region16: #{tpu_custom_call.1} parent=1 // pred_region
      %32 = vst [vmem:[#allocation5] sm:$0xff] 0.0
      %33 = vst [vmem:[#allocation5 + $0x8] sm:$0xff] 0.0
      %34 = vst [vmem:[#allocation5 + $0x10] sm:$0xff] 0.0
    $region17: #{tpu_custom_call.1} parent=1 // pred_fallthru
      _
    %v35 = vld [vmem:[%s0] sm:$0xff]
    %v36 = vld [vmem:[%s0 + $0x8] sm:$0xff]
    %v37 = vld [vmem:[#allocation2] sm:$0xff]
    %v38 = vld [vmem:[#allocation2 + $0x8] sm:$0xff]
    %v39 = vld [vmem:[#allocation2 + $0x10] sm:$0xff]
    %v40 = vld [vmem:[#allocation2 + $0x18] sm:$0xff]
    %v41 = vld [vmem:[#allocation2 + $0x20] sm:$0xff]
    %v42 = vld [vmem:[#allocation2 + $0x28] sm:$0xff]
    %v43 = vlaneseq
    %v44 = vand.u32 %v43, 127
    %v45 = vadd.s32 %v44, 128
    %v46 = vadd.s32 %v44, 256
    %s47 = smul.u32 0, 384
    %v48 = vstv %s47
    %v49 = vadd.s32 %v44, %v48
    %v50 = vadd.s32 %v45, %v48
    %v51 = vadd.s32 %v46, %v48
    %vm52 = vcmp.eq.s32.totalorder %v49, 0
    %vm53 = vcmp.eq.s32.totalorder %v50, 0
    %vm54 = vcmp.eq.s32.totalorder %v51, 0
    %v55 = vsel %vm52, 0.0, 0.0003144654
    %v56 = vsel %vm53, 0.0, 0.0003144654
    %v57 = vsel %vm54, 0.0, 0.0003144654
    %58 = vset.pattern.permute.xlu0 0
    %59 = vperm.xlu0 %58, %v35
    %v60 = vpop.permute.xlu0 %59
    %61 = vset.pattern.permute.xlu0 0
    %62 = vperm.xlu0 %61, %v36
    %v63 = vpop.permute.xlu0 %62
    %vm64 = vcmp.eq.s32.totalorder %v49, %v60
    %vm65 = vcmp.eq.s32.totalorder %v50, %v60
    %vm66 = vcmp.eq.s32.totalorder %v51, %v60
    %vm67 = vcmp.eq.s32.totalorder %v49, %v63
    %vm68 = vcmp.eq.s32.totalorder %v50, %v63
    %vm69 = vcmp.eq.s32.totalorder %v51, %v63
    %v70 = vsel %vm64, 0.9, %v55
    %v71 = vsel %vm65, 0.9, %v56
    %v72 = vsel %vm66, 0.9, %v57
    %v73 = vsel %vm67, 0.9, %v55
    %v74 = vsel %vm68, 0.9, %v56
    %v75 = vsel %vm69, 0.9, %v57
    %vm76 = vcmp.eq.s32.totalorder %v35, 0
    %vm77 = vcmp.eq.s32.totalorder %v36, 0
    %v78 = vsel %vm76, 1, 0
    %v79 = vsel %vm77, 1, 0
    %80 = vset.pattern.permute.xlu0 0
    %81 = vperm.xlu0 %80, %v78
    %v82 = vpop.permute.xlu0 %81
    %83 = vset.pattern.permute.xlu0 0
    %84 = vperm.xlu0 %83, %v79
    %v85 = vpop.permute.xlu0 %84
    %vm86 = vcmp.eq.s32.totalorder %v82, 1
    %vm87 = vcmp.eq.s32.totalorder %v85, 1
    %v88 = vsel %vm86, 0.0, %v70
    %v89 = vsel %vm86, 0.0, %v71
    %v90 = vsel %vm86, 0.0, %v72
    %v91 = vsel %vm87, 0.0, %v73
    %v92 = vsel %vm87, 0.0, %v74
    %v93 = vsel %vm87, 0.0, %v75
    %vm94 = vcmp.lt.s32.totalorder %v49, 320
    %vm95 = vcmp.lt.s32.totalorder %v50, 320
    %vm96 = vcmp.lt.s32.totalorder %v51, 320
    %v97 = vsel %vm94, %v88, 0.0
    %v98 = vsel %vm95, %v89, 0.0
    %v99 = vsel %vm96, %v90, 0.0
    %v100 = vsel %vm94, %v91, 0.0
    %v101 = vsel %vm95, %v92, 0.0
    %v102 = vsel %vm96, %v93, 0.0
    %v103 = vmul.f32 %v97, %v37
    %v104 = vmul.f32 %v98, %v38
    %v105 = vmul.f32 %v99, %v39
    %v106 = vmul.f32 %v100, %v40
    %v107 = vmul.f32 %v101, %v41
    %v108 = vmul.f32 %v102, %v42
    %v109 = vadd.f32 %v103, %v106
    %v110 = vadd.f32 %v104, %v107
    %v111 = vadd.f32 %v105, %v108
    %v112 = vld [vmem:[#allocation5] sm:$0xff]
    %v113 = vld [vmem:[#allocation5 + $0x8] sm:$0xff]
    %v114 = vld [vmem:[#allocation5 + $0x10] sm:$0xff]
    %v115 = vadd.f32 %v112, %v109
    %v116 = vadd.f32 %v113, %v110
    %v117 = vadd.f32 %v114, %v111
    %118 = vst [vmem:[#allocation5] sm:$0xff] %v115
    %119 = vst [vmem:[#allocation5 + $0x8] sm:$0xff] %v116
    %120 = vst [vmem:[#allocation5 + $0x10] sm:$0xff] %v117
    // Predicated region
    $region18: #{tpu_custom_call.1} parent=1 // pred_check
      _
    $region19: #{tpu_custom_call.1} parent=1 // pred_check_branch
      %122 = sbr.rel (0) target = $region21
    $region20: #{tpu_custom_call.1} parent=1 // pred_region
      %124 = vsyncadd [#allocation4], 0
      %s126 = sshll.u32 [#allocation5], 4
      %s127 = int_to_ptr.vmem [resolvable:$true] %s126
      %s128 = sshll.u32 %s2, 4
      %s129 = int_to_ptr.hbm [resolvable:$true] %s128
      %131 = dma.vmem_to_hbm [thread:$0]  %s127, 384, %s129, [#allocation4]
    $region21: #{tpu_custom_call.1} parent=1 // pred_fallthru
      _
    // Predicated region
    $region22: #{tpu_custom_call.1} parent=1 // pred_check
      _
    $region23: #{tpu_custom_call.1} parent=1 // pred_check_branch
      %133 = sbr.rel (0) target = $region25
    $region24: #{tpu_custom_call.1} parent=1 // pred_region
      %135 = dma.done [#allocation4], 384
    $region25: #{tpu_custom_call.1} parent=1 // pred_fallthru
      _
    %136 = vsyncpa [#allocation3], 1
    %137 = vsyncpa [#allocation4], 1

</llo_original>
